<compile_context>
chip_gen: v6e
topology: v6e:2x2x1
jax: 0.10.0
libtpu: 0.0.40
codegen_flags: <defaults>
</compile_context>

<pallas_src>
import jax
import jax.numpy as jnp
from jax.experimental import pallas as pl
from jax.experimental.pallas import tpu as pltpu

LANE = 128
_MIB = 1024 * 1024


def _round_up(x, m):
    return ((x + m - 1) // m) * m


def modely_kernel(u_ref, y_ref, o_ref):
    # u_ref : (TB, K)      batch tile of the flattened input
    # y_ref : (K+1, Np)    full parameter (lane-padded), resident in VMEM
    # o_ref : (TB, N)      narrow (un-padded) output tile, N = 10
    K = u_ref.shape[1]
    N = o_ref.shape[1]
    acc = jnp.dot(u_ref[...], y_ref[:K, :], preferred_element_type=jnp.float32)
    out = acc + y_ref[K:K + 1, :]          # bias row = folded ones column
    o_ref[...] = out[:, :N].astype(o_ref.dtype)


def _choose_tb(B, block_b):
    """Batch tile: multiple of 8 (or == B), ~8 grid steps, capped at block_b."""
    if B <= 8:
        return B                           # single block: dims == array dims
    tb = _round_up(pl.cdiv(B, 8), 8)       # aim for ~8 steps (v7x: 2 TCs busy)
    tb = min(tb, max(8, _round_up(block_b, 8)))
    return max(tb, 8)


def modely_forward(u, y, *, block_b=1024):
    """Pallas implementation of ModelY.forward (flag='Euclidean').

    u: (B, C, H, W) float32, y: (C*H*W + 1, 10) float32 -> (B, 10) float32
    """
    B = u.shape[0]
    u_flat = u.reshape(B, -1)              # torch u.view(B, -1), row-major
    K = u_flat.shape[1]
    N = y.shape[1]
    assert y.shape[0] == K + 1, "y must have one extra row for the ones column"
    dtype = u_flat.dtype
    itemsize = jnp.dtype(dtype).itemsize

    # Lane-pad the weight's N dim to 128 (one-time, ~50 KiB): lane-dense vregs
    # for the MXU; padded columns are zero and never stored (kernel slices :N).
    Np = _round_up(N, LANE)
    y_pad = jnp.pad(y.astype(dtype), ((0, 0), (0, Np - N)))     # (K+1, Np)

    TB = _choose_tb(B, block_b)
    grid = (pl.cdiv(B, TB),)               # ragged last block: no jnp.pad of u

    # Double-buffered VMEM footprint estimate (u + out + resident y).
    vmem_estimate = (2 * TB * K + 2 * TB * Np + 2 * (K + 1) * Np) * itemsize
    vmem_limit = None
    if vmem_estimate > 12 * _MIB:          # only needed above v5e's 16 MiB default
        vmem_limit = min(2 * vmem_estimate, 56 * _MIB)

    cost = pl.CostEstimate(
        flops=2 * B * K * N,
        transcendentals=0,
        bytes_accessed=(B * K + (K + 1) * Np + B * N) * itemsize,
    )

    out = pl.pallas_call(
        modely_kernel,
        out_shape=jax.ShapeDtypeStruct((B, N), dtype),
        grid=grid,
        in_specs=[
            # u: one batch tile per grid step (streamed, double-buffered).
            pl.BlockSpec((TB, K), lambda i: (i, 0)),
            # y: full padded parameter, constant block index -> stays resident.
            pl.BlockSpec((K + 1, Np), lambda i: (0, 0)),
        ],
        # Narrow output: last block dim == full array dim (legal); no zero
        # padding written back to HBM and no wrapper slice needed.
        out_specs=pl.BlockSpec((TB, N), lambda i: (i, 0)),
        compiler_params=pltpu.CompilerParams(
            dimension_semantics=("parallel",),
            vmem_limit_bytes=vmem_limit,
        ),
        cost_estimate=cost,
    )(u_flat, y_pad)

    return out


if __name__ == "__main__":
    key = jax.random.PRNGKey(0)
    k_u, k_y = jax.random.split(key)

    # MNIST-like shapes implied by y_size=[785, 10]: 784 = 1*28*28 pixels.
    B, C, H, W = 2, 1, 28, 28
    u = jax.random.normal(k_u, (B, C, H, W), dtype=jnp.float32)

    # Parameter y, flag='Euclidean' -> plain randn, shape (785, 10).
    y = jax.random.normal(k_y, (C * H * W + 1, 10), dtype=jnp.float32)

    out = jax.block_until_ready(modely_forward(u, y))

    # Reference: cat([u_flat, ones], 1) @ y
    u_flat = u.reshape(B, -1)
    prod = jnp.concatenate([u_flat, jnp.ones((B, 1), dtype=u.dtype)], axis=1)
    ref = prod @ y
    assert out.shape == (B, 10)
    assert jnp.allclose(out, ref, atol=1e-4, rtol=1e-4), "mismatch vs reference"

    print("KERNEL_OK")
</pallas_src>

<mosaic_0001>
module attributes {stable_mosaic.version = 11 : i64} {
  func.func @modely_kernel(%arg0: i32, %arg1: memref<2x784xf32, #tpu.memory_space<vmem>>, %arg2: memref<785x128xf32, #tpu.memory_space<vmem>>, %arg3: memref<2x10xf32, #tpu.memory_space<vmem>>) attributes {dimension_semantics = [#tpu.dimension_semantics<parallel>], iteration_bounds = array<i64: 1>, scalar_prefetch = 0 : i64, scratch_operands = 0 : i64, tpu.core_type = #tpu.core_type<tc>, window_params = [{transform_indices = @transform_0, window_bounds = array<i64: 2, 784>}, {pipeline_mode = #tpu.pipeline_mode<synchronous>, transform_indices = @transform_1, window_bounds = array<i64: 785, 128>}, {transform_indices = @transform_2, window_bounds = array<i64: 2, 10>}]} {
    %c0 = arith.constant 0 : index
    %c0_0 = arith.constant 0 : index
    %0 = vector.load %arg1[%c0, %c0_0] : memref<2x784xf32, #tpu.memory_space<vmem>>, vector<2x784xf32>
    %c0_1 = arith.constant 0 : index
    %c0_2 = arith.constant 0 : index
    %1 = vector.load %arg2[%c0_1, %c0_2] : memref<785x128xf32, #tpu.memory_space<vmem>>, vector<784x128xf32>
    %cst = arith.constant dense<0.000000e+00> : vector<2x128xf32>
    %2 = tpu.matmul %0, %1, %cst {dimension_numbers = #tpu.dot_dimension_numbers<[1], [0], [0], [1], [0, 0, 1, 1], [], []>} : vector<2x784xf32>, vector<784x128xf32>, vector<2x128xf32> -> vector<2x128xf32>
    %c784 = arith.constant 784 : index
    %c0_3 = arith.constant 0 : index
    %3 = vector.load %arg2[%c784, %c0_3] : memref<785x128xf32, #tpu.memory_space<vmem>>, vector<1x128xf32>
    %4 = vector.broadcast %3 : vector<1x128xf32> to vector<2x128xf32>
    %5 = arith.addf %2, %4 : vector<2x128xf32>
    %6 = vector.extract_strided_slice %5 {offsets = [0, 0], sizes = [2, 10], strides = [1, 1]} : vector<2x128xf32> to vector<2x10xf32>
    %c0_4 = arith.constant 0 : index
    %c0_5 = arith.constant 0 : index
    %7 = vector.load %arg3[%c0_4, %c0_5] : memref<2x10xf32, #tpu.memory_space<vmem>>, vector<2x10xf32>
    tpu.vector_store %arg3[%c0_4, %c0_5], %6 {strides = array<i32>} : memref<2x10xf32, #tpu.memory_space<vmem>>, vector<2x10xf32>,
    return
  }
  func.func @transform_0(%arg0: i32) -> (i32, i32) {
    %c0_i32 = arith.constant 0 : i32
    %c0_i32_0 = arith.constant 0 : i32
    return %arg0, %c0_i32 : i32, i32
  }
  func.func @transform_1(%arg0: i32) -> (i32, i32) {
    %c0_i32 = arith.constant 0 : i32
    %c0_i32_0 = arith.constant 0 : i32
    %c0_i32_1 = arith.constant 0 : i32
    return %c0_i32, %c0_i32_0 : i32, i32
  }
  func.func @transform_2(%arg0: i32) -> (i32, i32) {
    %c0_i32 = arith.constant 0 : i32
    %c0_i32_0 = arith.constant 0 : i32
    return %arg0, %c0_i32 : i32, i32
  }
}

</mosaic_0001>

<llo_original>
// kernel: tpu_custom_call.1
$region0: #{tpu_custom_call.1}
  #allocation0 [shape = 'u32[]', space=smem, size = 0x4, offset = 0x4, fixed_abs, tag = 'smem constant byte address 0x4 - core index']
  #allocation1 [shape = 'u32[144,128]{1,0:T(1,128)}', space=vmem, size = 0x12000, scoped, tag = 'internal scratch']
  %s0 = inlined_call_operand.hbm [shape: f32[2,784], index: 0, kind: input, shape index: {}]
  %s1 = inlined_call_operand.hbm [shape: f32[785,128], index: 1, kind: input, shape index: {}]
  %s2 = inlined_call_operand.hbm [shape: f32[2,10], index: 2, kind: output, shape index: {}]
  %s3 = sld [smem:[#allocation0]]
  $region26: #{tpu_custom_call.1} parent=0
    _
  %s5 = ssub.s32 1, %s3
  %s6 = scalar_select 0, %s5, %s3
  $region1: #{tpu_custom_call.1} parent=0
    #allocation2 [shape = 'u8[7168]{0}', space=vmem, size = 0x1c00, scoped, tag = 'input window, operand 0, single buffered']
    #allocation3 [shape = 's32[1]{0}', space=sflag, size = 0x4, scoped, tag = 'scoped memory for tpu_custom_call.1']
    #allocation4 [shape = 's32[1]{0}', space=sflag, size = 0x4, scoped, tag = 'scoped memory for tpu_custom_call.1']
    #allocation5 [shape = 'u8[405504]{0}', space=vmem, size = 0x63000, scoped, tag = 'input window, operand 1, single buffered']
    #allocation6 [shape = 's32[1]{0}', space=sflag, size = 0x4, scoped, tag = 'scoped memory for tpu_custom_call.1']
    #allocation7 [shape = 'u8[1024]{0}', space=vmem, size = 0x400, scoped, tag = 'output window, operand 0, single buffered']
    %7 = vsyncpa [#allocation3], 0
    %8 = vsyncpa [#allocation6], 0
    %9 = vsyncpa [#allocation4], 0
    // Predicated region
    $region2: #{tpu_custom_call.1} parent=1 // pred_check
      _
    $region3: #{tpu_custom_call.1} parent=1 // pred_check_branch
      %11 = sbr.rel (0) target = $region5
    $region4: #{tpu_custom_call.1} parent=1 // pred_region
      %s13 = ssub.s32 224, 224
      %14 = vsyncadd [#allocation3], %s13
      %s16 = sshll.u32 [#allocation2], 4
      %s17 = int_to_ptr.vmem [resolvable:$true] %s16
      %19 = dma.hbm_to_vmem [thread:$0]  %s0, 224, %s17, [#allocation3]
    $region5: #{tpu_custom_call.1} parent=1 // pred_fallthru
      _
    // Predicated region
    $region6: #{tpu_custom_call.1} parent=1 // pred_check
      _
    $region7: #{tpu_custom_call.1} parent=1 // pred_check_branch
      %21 = sbr.rel (0) target = $region9
    $region8: #{tpu_custom_call.1} parent=1 // pred_region
      %s23 = ssub.s32 12672, 12672
      %24 = vsyncadd [#allocation6], %s23
      %s25 = sshll.u32 [#allocation5], 4
      %s26 = int_to_ptr.vmem [resolvable:$true] %s25
      %31 = dma.hbm_to_vmem [thread:$0]  %s1, 12672, %s26, [#allocation6], 128, 128, 8
    $region9: #{tpu_custom_call.1} parent=1 // pred_fallthru
      _
    // Predicated region
    $region10: #{tpu_custom_call.1} parent=1 // pred_check
      _
    $region11: #{tpu_custom_call.1} parent=1 // pred_check_branch
      %33 = sbr.rel (0) target = $region13
    $region12: #{tpu_custom_call.1} parent=1 // pred_region
      %34 = dma.done [#allocation3], 224
    $region13: #{tpu_custom_call.1} parent=1 // pred_fallthru
      _
    // Predicated region
    $region14: #{tpu_custom_call.1} parent=1 // pred_check
      _
    $region15: #{tpu_custom_call.1} parent=1 // pred_check_branch
      %36 = sbr.rel (0) target = $region17
    $region16: #{tpu_custom_call.1} parent=1 // pred_region
      %37 = dma.done [#allocation6], 12672
    $region17: #{tpu_custom_call.1} parent=1 // pred_fallthru
      _
    %v38 = vld [vmem:[#allocation2] sm:$0xff]
    %v39 = vld [vmem:[#allocation2 + $0x8] sm:$0x3f]
    %v40 = vld [vmem:[#allocation5] sm:$0xff]
    %v41 = vld [vmem:[#allocation5 + $0x8] sm:$0xff]
    %v42 = vld [vmem:[#allocation5 + $0x10] sm:$0xff]
    %v43 = vld [vmem:[#allocation5 + $0x18] sm:$0xff]
    %v44 = vld [vmem:[#allocation5 + $0x20] sm:$0xff]
    %v45 = vld [vmem:[#allocation5 + $0x28] sm:$0xff]
    %v46 = vld [vmem:[#allocation5 + $0x30] sm:$0xff]
    %v47 = vld [vmem:[#allocation5 + $0x38] sm:$0xff]
    %v48 = vld [vmem:[#allocation5 + $0x40] sm:$0xff]
    %v49 = vld [vmem:[#allocation5 + $0x48] sm:$0xff]
    %v50 = vld [vmem:[#allocation5 + $0x50] sm:$0xff]
    %v51 = vld [vmem:[#allocation5 + $0x58] sm:$0xff]
    %v52 = vld [vmem:[#allocation5 + $0x60] sm:$0xff]
    %v53 = vld [vmem:[#allocation5 + $0x68] sm:$0xff]
    %v54 = vld [vmem:[#allocation5 + $0x70] sm:$0xff]
    %v55 = vld [vmem:[#allocation5 + $0x78] sm:$0xff]
    %v56 = vld [vmem:[#allocation5 + $0x80] sm:$0xff]
    %v57 = vld [vmem:[#allocation5 + $0x88] sm:$0xff]
    %v58 = vld [vmem:[#allocation5 + $0x90] sm:$0xff]
    %v59 = vld [vmem:[#allocation5 + $0x98] sm:$0xff]
    %v60 = vld [vmem:[#allocation5 + $0xa0] sm:$0xff]
    %v61 = vld [vmem:[#allocation5 + $0xa8] sm:$0xff]
    %v62 = vld [vmem:[#allocation5 + $0xb0] sm:$0xff]
    %v63 = vld [vmem:[#allocation5 + $0xb8] sm:$0xff]
    %v64 = vld [vmem:[#allocation5 + $0xc0] sm:$0xff]
    %v65 = vld [vmem:[#allocation5 + $0xc8] sm:$0xff]
    %v66 = vld [vmem:[#allocation5 + $0xd0] sm:$0xff]
    %v67 = vld [vmem:[#allocation5 + $0xd8] sm:$0xff]
    %v68 = vld [vmem:[#allocation5 + $0xe0] sm:$0xff]
    %v69 = vld [vmem:[#allocation5 + $0xe8] sm:$0xff]
    %v70 = vld [vmem:[#allocation5 + $0xf0] sm:$0xff]
    %v71 = vld [vmem:[#allocation5 + $0xf8] sm:$0xff]
    %v72 = vld [vmem:[#allocation5 + $0x100] sm:$0xff]
    %v73 = vld [vmem:[#allocation5 + $0x108] sm:$0xff]
    %v74 = vld [vmem:[#allocation5 + $0x110] sm:$0xff]
    %v75 = vld [vmem:[#allocation5 + $0x118] sm:$0xff]
    %v76 = vld [vmem:[#allocation5 + $0x120] sm:$0xff]
    %v77 = vld [vmem:[#allocation5 + $0x128] sm:$0xff]
    %v78 = vld [vmem:[#allocation5 + $0x130] sm:$0xff]
    %v79 = vld [vmem:[#allocation5 + $0x138] sm:$0xff]
    %v80 = vld [vmem:[#allocation5 + $0x140] sm:$0xff]
    %v81 = vld [vmem:[#allocation5 + $0x148] sm:$0xff]
    %v82 = vld [vmem:[#allocation5 + $0x150] sm:$0xff]
    %v83 = vld [vmem:[#allocation5 + $0x158] sm:$0xff]
    %v84 = vld [vmem:[#allocation5 + $0x160] sm:$0xff]
    %v85 = vld [vmem:[#allocation5 + $0x168] sm:$0xff]
    %v86 = vld [vmem:[#allocation5 + $0x170] sm:$0xff]
    %v87 = vld [vmem:[#allocation5 + $0x178] sm:$0xff]
    %v88 = vld [vmem:[#allocation5 + $0x180] sm:$0xff]
    %v89 = vld [vmem:[#allocation5 + $0x188] sm:$0xff]
    %v90 = vld [vmem:[#allocation5 + $0x190] sm:$0xff]
    %v91 = vld [vmem:[#allocation5 + $0x198] sm:$0xff]
    %v92 = vld [vmem:[#allocation5 + $0x1a0] sm:$0xff]
    %v93 = vld [vmem:[#allocation5 + $0x1a8] sm:$0xff]
    %v94 = vld [vmem:[#allocation5 + $0x1b0] sm:$0xff]
    %v95 = vld [vmem:[#allocation5 + $0x1b8] sm:$0xff]
    %v96 = vld [vmem:[#allocation5 + $0x1c0] sm:$0xff]
    %v97 = vld [vmem:[#allocation5 + $0x1c8] sm:$0xff]
    %v98 = vld [vmem:[#allocation5 + $0x1d0] sm:$0xff]
    %v99 = vld [vmem:[#allocation5 + $0x1d8] sm:$0xff]
    %v100 = vld [vmem:[#allocation5 + $0x1e0] sm:$0xff]
    %v101 = vld [vmem:[#allocation5 + $0x1e8] sm:$0xff]
    %v102 = vld [vmem:[#allocation5 + $0x1f0] sm:$0xff]
    %v103 = vld [vmem:[#allocation5 + $0x1f8] sm:$0xff]
    %v104 = vld [vmem:[#allocation5 + $0x200] sm:$0xff]
    %v105 = vld [vmem:[#allocation5 + $0x208] sm:$0xff]
    %v106 = vld [vmem:[#allocation5 + $0x210] sm:$0xff]
    %v107 = vld [vmem:[#allocation5 + $0x218] sm:$0xff]
    %v108 = vld [vmem:[#allocation5 + $0x220] sm:$0xff]
    %v109 = vld [vmem:[#allocation5 + $0x228] sm:$0xff]
    %v110 = vld [vmem:[#allocation5 + $0x230] sm:$0xff]
    %v111 = vld [vmem:[#allocation5 + $0x238] sm:$0xff]
    %v112 = vld [vmem:[#allocation5 + $0x240] sm:$0xff]
    %v113 = vld [vmem:[#allocation5 + $0x248] sm:$0xff]
    %v114 = vld [vmem:[#allocation5 + $0x250] sm:$0xff]
    %v115 = vld [vmem:[#allocation5 + $0x258] sm:$0xff]
    %v116 = vld [vmem:[#allocation5 + $0x260] sm:$0xff]
    %v117 = vld [vmem:[#allocation5 + $0x268] sm:$0xff]
    %v118 = vld [vmem:[#allocation5 + $0x270] sm:$0xff]
    %v119 = vld [vmem:[#allocation5 + $0x278] sm:$0xff]
    %v120 = vld [vmem:[#allocation5 + $0x280] sm:$0xff]
    %v121 = vld [vmem:[#allocation5 + $0x288] sm:$0xff]
    %v122 = vld [vmem:[#allocation5 + $0x290] sm:$0xff]
    %v123 = vld [vmem:[#allocation5 + $0x298] sm:$0xff]
    %v124 = vld [vmem:[#allocation5 + $0x2a0] sm:$0xff]
    %v125 = vld [vmem:[#allocation5 + $0x2a8] sm:$0xff]
    %v126 = vld [vmem:[#allocation5 + $0x2b0] sm:$0xff]
    %v127 = vld [vmem:[#allocation5 + $0x2b8] sm:$0xff]
    %v128 = vld [vmem:[#allocation5 + $0x2c0] sm:$0xff]
    %v129 = vld [vmem:[#allocation5 + $0x2c8] sm:$0xff]
    %v130 = vld [vmem:[#allocation5 + $0x2d0] sm:$0xff]
    %v131 = vld [vmem:[#allocation5 + $0x2d8] sm:$0xff]
    %v132 = vld [vmem:[#allocation5 + $0x2e0] sm:$0xff]
    %v133 = vld [vmem:[#allocation5 + $0x2e8] sm:$0xff]
    %v134 = vld [vmem:[#allocation5 + $0x2f0] sm:$0xff]
    %v135 = vld [vmem:[#allocation5 + $0x2f8] sm:$0xff]
    %v136 = vld [vmem:[#allocation5 + $0x300] sm:$0xff]
    %v137 = vld [vmem:[#allocation5 + $0x308] sm:$0xff]
    %v138 = vld [vmem:[#allocation5 + $0x310] sm:$0x1]
    %v139 = vlaneseq
    %v140 = vshrl.u32 %v139, 7
    %v141 = vsub.s32 0, %v140
    %v142 = vrot.slane %v138, %v141
    %v145 = vcombine.high %v38, %v38
    %v147 = vunpack.c.l.s4 1983009808
    %v148 = vunpack.c.0.s8 %v147
    %v149 = vlaneseq
    %v150 = vshrl.u32 %v149, 7
    %v151 = vsub.s32 %v148, %v150
    %v152 = vrot.slane %v38, %v151
    %v154 = vunpack.c.l.s4 1983009808
    %v155 = vunpack.c.0.s8 %v154
    %v156 = vlaneseq
    %v157 = vshrl.u32 %v156, 7
    %v158 = vsub.s32 %v155, %v157
    %v159 = vrot.slane %v145, %v158
    %v160 = vcombine.high %v152, %v152
    %v161 = vcombine.high %v159, %v159
    %v162 = vcombine.high %v39, %v39
    %v164 = vunpack.c.l.s4 1983009808
    %v165 = vunpack.c.0.s8 %v164
    %v166 = vlaneseq
    %v167 = vshrl.u32 %v166, 7
    %v168 = vsub.s32 %v165, %v167
    %v169 = vrot.slane %v39, %v168
    %v171 = vunpack.c.l.s4 1983009808
    %v172 = vunpack.c.0.s8 %v171
    %v173 = vlaneseq
    %v174 = vshrl.u32 %v173, 7
    %v175 = vsub.s32 %v172, %v174
    %v176 = vrot.slane %v162, %v175
    %v177 = vcombine.high %v169, %v169
    %vm184 = vcmask 130048
    %v185 = vsel %vm184, %v176, 0
    %187 = vmatprep.subr.mxu0 0.0
    %188 = vmatpush1.msra.mxu0 %v55
    %189 = vmatprep.subr.mxu0 0.0
    %190 = vmatpush1.msra.mxu0 %v54
    %191 = vmatprep.subr.mxu0 0.0
    %192 = vmatpush1.msra.mxu0 %v53
    %193 = vmatprep.subr.mxu0 0.0
    %194 = vmatpush1.msra.mxu0 %v52
    %195 = vmatprep.subr.mxu0 0.0
    %196 = vmatpush1.msra.mxu0 %v51
    %197 = vmatprep.subr.mxu0 0.0
    %198 = vmatpush1.msra.mxu0 %v50
    %199 = vmatprep.subr.mxu0 0.0
    %200 = vmatpush1.msra.mxu0 %v49
    %201 = vmatprep.subr.mxu0 0.0
    %202 = vmatpush1.msra.mxu0 %v48
    %203 = vmatprep.subr.mxu0 0.0
    %204 = vmatpush1.msra.mxu0 %v47
    %205 = vmatprep.subr.mxu0 0.0
    %206 = vmatpush1.msra.mxu0 %v46
    %207 = vmatprep.subr.mxu0 0.0
    %208 = vmatpush1.msra.mxu0 %v45
    %209 = vmatprep.subr.mxu0 0.0
    %210 = vmatpush1.msra.mxu0 %v44
    %211 = vmatprep.subr.mxu0 0.0
    %212 = vmatpush1.msra.mxu0 %v43
    %213 = vmatprep.subr.mxu0 0.0
    %214 = vmatpush1.msra.mxu0 %v42
    %215 = vmatprep.subr.mxu0 0.0
    %216 = vmatpush1.msra.mxu0 %v41
    %217 = vmatprep.subr.mxu0 0.0
    %218 = vmatpush1.msra.mxu0 %v40
    %219 = vmatprep.subr.mxu0 0.0
    %220 = vmatpush2.msra.mxu0 %v71
    %221 = vmatprep.subr.mxu0 0.0
    %222 = vmatpush2.msra.mxu0 %v70
    %223 = vmatprep.subr.mxu0 0.0
    %224 = vmatpush2.msra.mxu0 %v69
    %225 = vmatprep.subr.mxu0 0.0
    %226 = vmatpush2.msra.mxu0 %v68
    %227 = vmatprep.subr.mxu0 0.0
    %228 = vmatpush2.msra.mxu0 %v67
    %229 = vmatprep.subr.mxu0 0.0
    %230 = vmatpush2.msra.mxu0 %v66
    %231 = vmatprep.subr.mxu0 0.0
    %232 = vmatpush2.msra.mxu0 %v65
    %233 = vmatprep.subr.mxu0 0.0
    %234 = vmatpush2.msra.mxu0 %v64
    %235 = vmatprep.subr.mxu0 0.0
    %236 = vmatpush2.msra.mxu0 %v63
    %237 = vmatprep.subr.mxu0 0.0
    %238 = vmatpush2.msra.mxu0 %v62
    %239 = vmatprep.subr.mxu0 0.0
    %240 = vmatpush2.msra.mxu0 %v61
    %241 = vmatprep.subr.mxu0 0.0
    %242 = vmatpush2.msra.mxu0 %v60
    %243 = vmatprep.subr.mxu0 0.0
    %244 = vmatpush2.msra.mxu0 %v59
    %245 = vmatprep.subr.mxu0 0.0
    %246 = vmatpush2.msra.mxu0 %v58
    %247 = vmatprep.subr.mxu0 0.0
    %248 = vmatpush2.msra.mxu0 %v57
    %249 = vmatprep.subr.mxu0 0.0
    %250 = vmatpush2.msra.mxu0 %v56
    %251 = vmatprep.mubr.f32.mxu0 %v160
    %252 = vmatmul.mubr.f32.gmra.mxu0 %v152
    %v253 = vpop.f32.mrf.mxu0
    %v254 = vadd.f32 %v142, %v253
    %v255 = vpop.f32.mrf.mxu0
    %256 = vdwg.mxu0
    %257 = vmatprep.subr.mxu0 0.0
    %258 = vmatpush1.msra.mxu0 %v87
    %259 = vmatprep.subr.mxu0 0.0
    %260 = vmatpush1.msra.mxu0 %v86
    %261 = vmatprep.subr.mxu0 0.0
    %262 = vmatpush1.msra.mxu0 %v85
    %263 = vmatprep.subr.mxu0 0.0
    %264 = vmatpush1.msra.mxu0 %v84
    %265 = vmatprep.subr.mxu0 0.0
    %266 = vmatpush1.msra.mxu0 %v83
    %267 = vmatprep.subr.mxu0 0.0
    %268 = vmatpush1.msra.mxu0 %v82
    %269 = vmatprep.subr.mxu0 0.0
    %270 = vmatpush1.msra.mxu0 %v81
    %271 = vmatprep.subr.mxu0 0.0
    %272 = vmatpush1.msra.mxu0 %v80
    %273 = vmatprep.subr.mxu0 0.0
    %274 = vmatpush1.msra.mxu0 %v79
    %275 = vmatprep.subr.mxu0 0.0
    %276 = vmatpush1.msra.mxu0 %v78
    %277 = vmatprep.subr.mxu0 0.0
    %278 = vmatpush1.msra.mxu0 %v77
    %279 = vmatprep.subr.mxu0 0.0
    %280 = vmatpush1.msra.mxu0 %v76
    %281 = vmatprep.subr.mxu0 0.0
    %282 = vmatpush1.msra.mxu0 %v75
    %283 = vmatprep.subr.mxu0 0.0
    %284 = vmatpush1.msra.mxu0 %v74
    %285 = vmatprep.subr.mxu0 0.0
    %286 = vmatpush1.msra.mxu0 %v73
    %287 = vmatprep.subr.mxu0 0.0
    %288 = vmatpush1.msra.mxu0 %v72
    %289 = vmatprep.subr.mxu0 0.0
    %290 = vmatpush2.msra.mxu0 %v103
    %291 = vmatprep.subr.mxu0 0.0
    %292 = vmatpush2.msra.mxu0 %v102
    %293 = vmatprep.subr.mxu0 0.0
    %294 = vmatpush2.msra.mxu0 %v101
    %295 = vmatprep.subr.mxu0 0.0
    %296 = vmatpush2.msra.mxu0 %v100
    %297 = vmatprep.subr.mxu0 0.0
    %298 = vmatpush2.msra.mxu0 %v99
    %299 = vmatprep.subr.mxu0 0.0
    %300 = vmatpush2.msra.mxu0 %v98
    %301 = vmatprep.subr.mxu0 0.0
    %302 = vmatpush2.msra.mxu0 %v97
    %303 = vmatprep.subr.mxu0 0.0
    %304 = vmatpush2.msra.mxu0 %v96
    %305 = vmatprep.subr.mxu0 0.0
    %306 = vmatpush2.msra.mxu0 %v95
    %307 = vmatprep.subr.mxu0 0.0
    %308 = vmatpush2.msra.mxu0 %v94
    %309 = vmatprep.subr.mxu0 0.0
    %310 = vmatpush2.msra.mxu0 %v93
    %311 = vmatprep.subr.mxu0 0.0
    %312 = vmatpush2.msra.mxu0 %v92
    %313 = vmatprep.subr.mxu0 0.0
    %314 = vmatpush2.msra.mxu0 %v91
    %315 = vmatprep.subr.mxu0 0.0
    %316 = vmatpush2.msra.mxu0 %v90
    %317 = vmatprep.subr.mxu0 0.0
    %318 = vmatpush2.msra.mxu0 %v89
    %319 = vmatprep.subr.mxu0 0.0
    %320 = vmatpush2.msra.mxu0 %v88
    %321 = vmatprep.mubr.f32.mxu0 %v161
    %322 = vmatmul.mubr.f32.gmra.mxu0 %v159
    %v323 = vpop.f32.mrf.mxu0
    %v324 = vadd.f32 %v254, %v323
    %v325 = vpop.f32.mrf.mxu0
    %326 = vdwg.mxu0
    %327 = vmatprep.subr.mxu0 0.0
    %328 = vmatpush1.msra.mxu0 %v119
    %329 = vmatprep.subr.mxu0 0.0
    %330 = vmatpush1.msra.mxu0 %v118
    %331 = vmatprep.subr.mxu0 0.0
    %332 = vmatpush1.msra.mxu0 %v117
    %333 = vmatprep.subr.mxu0 0.0
    %334 = vmatpush1.msra.mxu0 %v116
    %335 = vmatprep.subr.mxu0 0.0
    %336 = vmatpush1.msra.mxu0 %v115
    %337 = vmatprep.subr.mxu0 0.0
    %338 = vmatpush1.msra.mxu0 %v114
    %339 = vmatprep.subr.mxu0 0.0
    %340 = vmatpush1.msra.mxu0 %v113
    %341 = vmatprep.subr.mxu0 0.0
    %342 = vmatpush1.msra.mxu0 %v112
    %343 = vmatprep.subr.mxu0 0.0
    %344 = vmatpush1.msra.mxu0 %v111
    %345 = vmatprep.subr.mxu0 0.0
    %346 = vmatpush1.msra.mxu0 %v110
    %347 = vmatprep.subr.mxu0 0.0
    %348 = vmatpush1.msra.mxu0 %v109
    %349 = vmatprep.subr.mxu0 0.0
    %350 = vmatpush1.msra.mxu0 %v108
    %351 = vmatprep.subr.mxu0 0.0
    %352 = vmatpush1.msra.mxu0 %v107
    %353 = vmatprep.subr.mxu0 0.0
    %354 = vmatpush1.msra.mxu0 %v106
    %355 = vmatprep.subr.mxu0 0.0
    %356 = vmatpush1.msra.mxu0 %v105
    %357 = vmatprep.subr.mxu0 0.0
    %358 = vmatpush1.msra.mxu0 %v104
    %359 = vmatprep.subr.mxu0 0.0
    %360 = vmatpush2.msra.mxu0 %v135
    %361 = vmatprep.subr.mxu0 0.0
    %362 = vmatpush2.msra.mxu0 %v134
    %363 = vmatprep.subr.mxu0 0.0
    %364 = vmatpush2.msra.mxu0 %v133
    %365 = vmatprep.subr.mxu0 0.0
    %366 = vmatpush2.msra.mxu0 %v132
    %367 = vmatprep.subr.mxu0 0.0
    %368 = vmatpush2.msra.mxu0 %v131
    %369 = vmatprep.subr.mxu0 0.0
    %370 = vmatpush2.msra.mxu0 %v130
    %371 = vmatprep.subr.mxu0 0.0
    %372 = vmatpush2.msra.mxu0 %v129
    %373 = vmatprep.subr.mxu0 0.0
    %374 = vmatpush2.msra.mxu0 %v128
    %375 = vmatprep.subr.mxu0 0.0
    %376 = vmatpush2.msra.mxu0 %v127
    %377 = vmatprep.subr.mxu0 0.0
    %378 = vmatpush2.msra.mxu0 %v126
    %379 = vmatprep.subr.mxu0 0.0
    %380 = vmatpush2.msra.mxu0 %v125
    %381 = vmatprep.subr.mxu0 0.0
    %382 = vmatpush2.msra.mxu0 %v124
    %383 = vmatprep.subr.mxu0 0.0
    %384 = vmatpush2.msra.mxu0 %v123
    %385 = vmatprep.subr.mxu0 0.0
    %386 = vmatpush2.msra.mxu0 %v122
    %387 = vmatprep.subr.mxu0 0.0
    %388 = vmatpush2.msra.mxu0 %v121
    %389 = vmatprep.subr.mxu0 0.0
    %390 = vmatpush2.msra.mxu0 %v120
    %391 = vmatprep.mubr.f32.mxu0 %v177
    %392 = vmatmul.mubr.f32.gmra.mxu0 %v169
    %v393 = vpop.f32.mrf.mxu0
    %v394 = vadd.f32 %v324, %v393
    %v395 = vpop.f32.mrf.mxu0
    %396 = vdwg.mxu0
    %397 = vmatprep.subr.mxu0 0.0
    %398 = vmatpush1.msra.mxu0 0.0
    %399 = vmatprep.subr.mxu0 0.0
    %400 = vmatpush1.msra.mxu0 0.0
    %401 = vmatprep.subr.mxu0 0.0
    %402 = vmatpush1.msra.mxu0 0.0
    %403 = vmatprep.subr.mxu0 0.0
    %404 = vmatpush1.msra.mxu0 0.0
    %405 = vmatprep.subr.mxu0 0.0
    %406 = vmatpush1.msra.mxu0 0.0
    %407 = vmatprep.subr.mxu0 0.0
    %408 = vmatpush1.msra.mxu0 0.0
    %409 = vmatprep.subr.mxu0 0.0
    %410 = vmatpush1.msra.mxu0 0.0
    %411 = vmatprep.subr.mxu0 0.0
    %412 = vmatpush1.msra.mxu0 0.0
    %413 = vmatprep.subr.mxu0 0.0
    %414 = vmatpush1.msra.mxu0 0.0
    %415 = vmatprep.subr.mxu0 0.0
    %416 = vmatpush1.msra.mxu0 0.0
    %417 = vmatprep.subr.mxu0 0.0
    %418 = vmatpush1.msra.mxu0 0.0
    %419 = vmatprep.subr.mxu0 0.0
    %420 = vmatpush1.msra.mxu0 0.0
    %421 = vmatprep.subr.mxu0 0.0
    %422 = vmatpush1.msra.mxu0 0.0
    %423 = vmatprep.subr.mxu0 0.0
    %424 = vmatpush1.msra.mxu0 0.0
    %425 = vmatprep.subr.mxu0 0.0
    %426 = vmatpush1.msra.mxu0 %v137
    %427 = vmatprep.subr.mxu0 0.0
    %428 = vmatpush1.msra.mxu0 %v136
    %429 = vmatprep.subr.mxu0 0.0
    %430 = vmatpush2.msra.mxu0 0.0
    %431 = vmatprep.subr.mxu0 0.0
    %432 = vmatpush2.msra.mxu0 0.0
    %433 = vmatprep.subr.mxu0 0.0
    %434 = vmatpush2.msra.mxu0 0.0
    %435 = vmatprep.subr.mxu0 0.0
    %436 = vmatpush2.msra.mxu0 0.0
    %437 = vmatprep.subr.mxu0 0.0
    %438 = vmatpush2.msra.mxu0 0.0
    %439 = vmatprep.subr.mxu0 0.0
    %440 = vmatpush2.msra.mxu0 0.0
    %441 = vmatprep.subr.mxu0 0.0
    %442 = vmatpush2.msra.mxu0 0.0
    %443 = vmatprep.subr.mxu0 0.0
    %444 = vmatpush2.msra.mxu0 0.0
    %445 = vmatprep.subr.mxu0 0.0
    %446 = vmatpush2.msra.mxu0 0.0
    %447 = vmatprep.subr.mxu0 0.0
    %448 = vmatpush2.msra.mxu0 0.0
    %449 = vmatprep.subr.mxu0 0.0
    %450 = vmatpush2.msra.mxu0 0.0
    %451 = vmatprep.subr.mxu0 0.0
    %452 = vmatpush2.msra.mxu0 0.0
    %453 = vmatprep.subr.mxu0 0.0
    %454 = vmatpush2.msra.mxu0 0.0
    %455 = vmatprep.subr.mxu0 0.0
    %456 = vmatpush2.msra.mxu0 0.0
    %457 = vmatprep.subr.mxu0 0.0
    %458 = vmatpush2.msra.mxu0 0.0
    %459 = vmatprep.subr.mxu0 0.0
    %460 = vmatpush2.msra.mxu0 0.0
    %461 = vmatprep.mubr.f32.mxu0 0.0
    %462 = vmatmul.mubr.f32.gmra.mxu0 %v185
    %v463 = vpop.f32.mrf.mxu0
    %v464 = vadd.f32 %v394, %v463
    %v465 = vpop.f32.mrf.mxu0
    %466 = vdwg.mxu0
    %vm467 = vcmask 74752
    %468 = vst.msk [vmem:[#allocation7] sm:$0x3] %vm467, %v464
    // Predicated region
    $region18: #{tpu_custom_call.1} parent=1 // pred_check
      _
    $region19: #{tpu_custom_call.1} parent=1 // pred_check_branch
      %470 = sbr.rel (0) target = $region21
    $region20: #{tpu_custom_call.1} parent=1 // pred_region
      %s472 = ssub.s32 32, 32
      %473 = vsyncadd [#allocation4], %s472
      %s475 = sshll.u32 [#allocation7], 4
      %s476 = int_to_ptr.vmem [resolvable:$true] %s475
      %478 = dma.vmem_to_hbm [thread:$0]  %s476, 32, %s2, [#allocation4]
    $region21: #{tpu_custom_call.1} parent=1 // pred_fallthru
      _
    // Predicated region
    $region22: #{tpu_custom_call.1} parent=1 // pred_check
      _
    $region23: #{tpu_custom_call.1} parent=1 // pred_check_branch
      %480 = sbr.rel (0) target = $region25
    $region24: #{tpu_custom_call.1} parent=1 // pred_region
      %481 = dma.done [#allocation4], 32
    $region25: #{tpu_custom_call.1} parent=1 // pred_fallthru
      _
    %482 = vsyncpa [#allocation3], 1
    %483 = vsyncpa [#allocation6], 1
    %484 = vsyncpa [#allocation4], 1

</llo_original>
